<compile_context>
chip_gen: v7x
topology: tpu7x:2x2x1
jax: 0.10.0
libtpu: 0.0.40
codegen_flags: <defaults>
</compile_context>

<pallas_src>
import jax
import jax.numpy as jnp
from jax.experimental import pallas as pl
from jax.experimental.pallas import tpu as pltpu

F32 = jnp.float32
BF16 = jnp.bfloat16
VMEM = pl.BlockSpec(memory_space=pltpu.MemorySpace.VMEM)


# ----------------------------- helpers -----------------------------

def _pick_row_tile(hw, max_rows=1024):
    """Largest row tile that divides hw, is a multiple of 8 (sublane), and <= max_rows."""
    if hw <= max_rows:
        return hw
    best = 0
    for t in range(8, max_rows + 1, 8):
        if hw % t == 0:
            best = t
    return best if best > 0 else hw   # fallback: single (un-tiled) block


# ----------------------------- fused conv + AdaptiveConcatPool2d -----------------------------

def conv_pool_forward(patches, w, b):
    """patches: (N, HW, Kp) bf16, w: (Kp, C) bf16, b: (1, C) f32 -> (N, 2C) f32 = [max | avg]."""
    N, HW, Kp = patches.shape
    C = w.shape[1]
    tile = _pick_row_tile(HW)
    grid = (N, HW // tile)
    inv_hw = 1.0 / float(HW)

    def kernel(p_ref, w_ref, b_ref, o_ref, max_acc, sum_acc):
        t = pl.program_id(1)

        @pl.when(t == 0)
        def _():
            max_acc[...] = jnp.full(max_acc.shape, -jnp.inf, max_acc.dtype)
            sum_acc[...] = jnp.zeros(sum_acc.shape, sum_acc.dtype)

        # patchified conv tile: (tile, Kp) @ (Kp, C) + bias, ReLU (bf16 MXU, f32 acc)
        feat = jnp.maximum(
            jnp.dot(p_ref[0], w_ref[...], preferred_element_type=jnp.float32) + b_ref[...],
            0.0,
        )
        max_acc[...] = jnp.maximum(max_acc[...], jnp.max(feat, axis=0, keepdims=True))
        sum_acc[...] = sum_acc[...] + jnp.sum(feat, axis=0, keepdims=True)

        @pl.when(t == pl.num_programs(1) - 1)
        def _():
            # AdaptiveConcatPool2d: cat([max_pool, avg_pool], dim=1)
            o_ref[0] = jnp.concatenate((max_acc[...], sum_acc[...] * inv_hw), axis=-1)

    out = pl.pallas_call(
        kernel,
        out_shape=jax.ShapeDtypeStruct((N, 1, 2 * C), F32),
        grid=grid,
        in_specs=[
            pl.BlockSpec((1, tile, Kp), lambda n, t: (n, t, 0)),   # patch row tiles
            pl.BlockSpec((Kp, C), lambda n, t: (0, 0)),            # weight stays resident
            pl.BlockSpec((1, C), lambda n, t: (0, 0)),
        ],
        out_specs=pl.BlockSpec((1, 1, 2 * C), lambda n, t: (n, 0, 0)),
        scratch_shapes=[pltpu.VMEM((1, C), F32), pltpu.VMEM((1, C), F32)],
        compiler_params=pltpu.CompilerParams(
            # n is independent (megacore-shardable on v7x); the HW tile axis is a reduction.
            dimension_semantics=("parallel", "arbitrary"),
            # tiles are sized so double-buffered footprint stays well under v7x's 64 MiB VMEM.
            vmem_limit_bytes=32 * 1024 * 1024,
        ),
    )(patches, w, b)
    return out.reshape(N, 2 * C)


# ----------------------------- fused encoder MLP + feedback concat -----------------------------

def _encoder_concat_kernel(x_ref, yc_ref, s1_ref, t1_ref, w1_ref, b1_ref,
                           s2_ref, t2_ref, w2_ref, b2_ref, o_ref):
    # BN1d(1024) -> Dropout(id) -> Linear(1024,512) -> ReLU -> BN1d(512) -> Dropout(id)
    # -> Linear(512, encode_size), then concat with y_context.  BN folded to scale/shift
    # (eval mode).  Matmul operands bf16, elementwise f32.
    x = x_ref[...] * s1_ref[...] + t1_ref[...]
    h = jnp.maximum(
        jnp.dot(x.astype(BF16), w1_ref[...], preferred_element_type=jnp.float32) + b1_ref[...],
        0.0,
    )
    h = h * s2_ref[...] + t2_ref[...]
    enc = jnp.dot(h.astype(BF16), w2_ref[...], preferred_element_type=jnp.float32) + b2_ref[...]
    o_ref[...] = jnp.concatenate((enc, yc_ref[...]), axis=1)


def encoder_concat_forward(pooled, y_ctx, p):
    N = pooled.shape[0]
    D = p["w2"].shape[1] + y_ctx.shape[1]
    return pl.pallas_call(
        _encoder_concat_kernel,
        out_shape=jax.ShapeDtypeStruct((N, D), F32),
        in_specs=[VMEM] * 10,
        out_specs=VMEM,
    )(pooled, y_ctx, p["s1"], p["t1"], p["w1"], p["b1"], p["s2"], p["t2"], p["w2"], p["b2"])


# ----------------------------- LSTM (+ fused final Linear) -----------------------------

def _make_lstm_kernel(num_layers, seq_len, bs, hidden):
    """Multi-layer LSTM, PyTorch gate order [i, f, g, o].

    Input projection is hoisted out of the time loop (one (T*B,D)@(D,4H) matmul
    per layer); the recurrence only does h@whh per step.  Per-step hidden states
    are streamed to a VMEM scratch buffer (bounds vreg live ranges) and the final
    Linear(hidden, output) is fused at the end.
    """
    def kernel(*refs):
        x_ref, h0_ref, c0_ref = refs[:3]
        w_refs = refs[3:3 + 3 * num_layers]
        linw_ref = refs[3 + 3 * num_layers]
        linb_ref = refs[4 + 3 * num_layers]
        pred_ref, hn_ref, cn_ref = refs[5 + 3 * num_layers:8 + 3 * num_layers]
        seq_buf, gin_buf = refs[8 + 3 * num_layers:]

        for l in range(num_layers):
            wih = w_refs[3 * l][...]          # (D_l, 4H) bf16
            whh = w_refs[3 * l + 1][...]      # (H, 4H)   bf16
            b = w_refs[3 * l + 2][...]        # (1, 4H)   f32 = b_ih + b_hh

            src = x_ref[...] if l == 0 else seq_buf[...]          # (T, B, D_l)
            din = src.shape[-1]
            # hoisted input projection for all timesteps at once
            gin = jnp.dot(src.reshape(seq_len * bs, din).astype(BF16), wih,
                          preferred_element_type=jnp.float32) + b
            gin_buf[...] = gin.reshape(seq_len, bs, 4 * hidden)

            def step(t, carry):
                h, c = carry
                gates = gin_buf[t] + jnp.dot(h.astype(BF16), whh,
                                             preferred_element_type=jnp.float32)
                i = jax.nn.sigmoid(gates[:, 0 * hidden:1 * hidden])
                f = jax.nn.sigmoid(gates[:, 1 * hidden:2 * hidden])
                g = jnp.tanh(gates[:, 2 * hidden:3 * hidden])
                o = jax.nn.sigmoid(gates[:, 3 * hidden:4 * hidden])
                c = f * c + i * g
                h = o * jnp.tanh(c)
                seq_buf[t] = h                # stream to VMEM, feeds next layer
                return (h, c)

            h, c = jax.lax.fori_loop(0, seq_len, step, (h0_ref[l], c0_ref[l]),
                                     unroll=True)
            hn_ref[l] = h
            cn_ref[l] = c

        # fused final Linear(hidden, output) on the last layer's outputs
        flat = seq_buf[...].reshape(seq_len * bs, hidden)
        pred_ref[...] = (jnp.dot(flat.astype(BF16), linw_ref[...],
                                 preferred_element_type=jnp.float32) + linb_ref[...])
    return kernel


def lstm_linear_forward(x, h0, c0, layer_params, lin_w, lin_b):
    seq_len, bs, _ = x.shape
    num_layers, _, hidden = h0.shape
    out_size = lin_w.shape[1]
    flat = []
    for wih, whh, b in layer_params:
        flat += [wih, whh, b]
    kernel = _make_lstm_kernel(num_layers, seq_len, bs, hidden)
    out_shapes = (
        jax.ShapeDtypeStruct((seq_len * bs, out_size), F32),        # pred
        jax.ShapeDtypeStruct((num_layers, bs, hidden), F32),        # h_n
        jax.ShapeDtypeStruct((num_layers, bs, hidden), F32),        # c_n
    )
    return pl.pallas_call(
        kernel,
        out_shape=out_shapes,
        in_specs=[VMEM] * (5 + len(flat)),
        out_specs=(VMEM, VMEM, VMEM),
        scratch_shapes=[pltpu.VMEM((seq_len, bs, hidden), F32),
                        pltpu.VMEM((seq_len, bs, 4 * hidden), F32)],
    )(x, h0, c0, *flat, lin_w, lin_b)


# ----------------------------- parameter init helpers -----------------------------

def _xavier(key, shape):           # xavier_normal, shape = (fan_in, fan_out)
    std = (2.0 / (shape[0] + shape[1])) ** 0.5
    return std * jax.random.normal(key, shape, F32)


def _kaiming(key, shape):          # kaiming_normal, shape = (fan_in, fan_out)
    std = (2.0 / shape[0]) ** 0.5
    return std * jax.random.normal(key, shape, F32)


# ----------------------------- module port -----------------------------

class CNNtoRNNFeedbackPallas:
    FEAT_CH = 512   # ResNet34's final channel count -> AdaptiveConcatPool2d gives 1024
    PATCH = 4       # patchify-conv kernel == stride

    def __init__(self, encode_size, hidden_size, num_layers, seq_len, bs,
                 output_size, use_ground_truth, key):
        self.encode_size = encode_size
        self.hidden_size = hidden_size
        self.num_layers = num_layers
        self.seq_len = seq_len
        self.bs = bs
        self.output_size = output_size
        self.use_ground_truth = use_ground_truth
        self.training = False

        keys = iter(jax.random.split(key, 8 + 2 * num_layers))

        # TODO(synk): frozen *pretrained* ResNet34 backbone replaced by a single
        # synthetic patchify conv (3 -> 512 channels) + ReLU; pretrained weights
        # cannot be loaded in-script.
        k = self.PATCH
        kin = 3 * k * k
        self.KPAD = ((kin + 127) // 128) * 128       # pad contraction dim to 128 lanes
        conv_w = _kaiming(next(keys), (kin, self.FEAT_CH))
        self.conv_w = jnp.pad(conv_w, ((0, self.KPAD - kin), (0, 0))).astype(BF16)
        self.conv_b = jnp.zeros((1, self.FEAT_CH), F32)

        # encoder_linear params (BN folded to scale/shift with PyTorch defaults, eval mode)
        eps = 1e-5
        g1, beta1 = jnp.ones((1, 1024), F32), jnp.zeros((1, 1024), F32)
        rm1, rv1 = jnp.zeros((1, 1024), F32), jnp.ones((1, 1024), F32)
        s1 = g1 * jax.lax.rsqrt(rv1 + eps)
        t1 = beta1 - rm1 * s1
        g2, beta2 = jnp.ones((1, 512), F32), jnp.zeros((1, 512), F32)
        rm2, rv2 = jnp.zeros((1, 512), F32), jnp.ones((1, 512), F32)
        s2 = g2 * jax.lax.rsqrt(rv2 + eps)
        t2 = beta2 - rm2 * s2
        self.enc_lin = dict(
            s1=s1, t1=t1,
            w1=_kaiming(next(keys), (1024, 512)).astype(BF16), b1=jnp.zeros((1, 512), F32),
            s2=s2, t2=t2,
            w2=_kaiming(next(keys), (512, encode_size)).astype(BF16),
            b2=jnp.zeros((1, encode_size), F32),
        )

        # LSTM(encode_size + output_size, hidden_size, num_layers); xavier weights, zero biases
        self.lstm_params = []
        in_dim = encode_size + output_size
        for _ in range(num_layers):
            wih = _xavier(next(keys), (in_dim, 4 * hidden_size)).astype(BF16)
            whh = _xavier(next(keys), (hidden_size, 4 * hidden_size)).astype(BF16)
            b = jnp.zeros((1, 4 * hidden_size), F32)      # bias_ih + bias_hh (both zero)
            self.lstm_params.append((wih, whh, b))
            in_dim = hidden_size

        # final Linear(hidden_size, output_size)
        self.lin_w = _kaiming(next(keys), (hidden_size, output_size)).astype(BF16)
        self.lin_b = jnp.zeros((1, output_size), F32)

        self.h, self.c = self.init_hidden()
        self.last_pred = jnp.zeros((seq_len * bs, output_size), F32)

    def init_hidden(self):
        z = jnp.zeros((self.num_layers, self.bs, self.hidden_size), F32)
        return z, z

    def reset(self):
        self.h, self.c = self.init_hidden()

    def _encoder(self, x):
        # x: (N, 3, H, W) NCHW -> synthetic backbone conv + ReLU -> AdaptiveConcatPool2d -> Flatten
        N, C, H, W = x.shape
        k = self.PATCH
        assert H % k == 0 and W % k == 0, "image H/W must be divisible by PATCH"
        Ho, Wo = H // k, W // k
        # TODO(synk): patch extraction (6-D transpose) still materializes in XLA; an
        # in-kernel gather over (n, ho, wo) blocks would remove this extra HBM pass.
        patches = x.reshape(N, C, Ho, k, Wo, k).transpose(0, 2, 4, 1, 3, 5)
        patches = patches.reshape(N, Ho * Wo, C * k * k)
        patches = jnp.pad(patches, ((0, 0), (0, 0), (0, self.KPAD - C * k * k))).astype(BF16)
        return conv_pool_forward(patches, self.conv_w, self.conv_b)   # (N, 1024) = [max | avg]

    def forward(self, x, y_prev):
        assert x.shape[0] == self.seq_len * self.bs, "leading image axis must be seq_len*bs"
        if self.use_ground_truth and self.training:
            y_context = y_prev
        else:
            y_context = self.last_pred
        # TODO(synk): Dropout layers are identity (eval mode); train-mode dropout RNG not modeled.
        pooled = self._encoder(x)                                       # (N, 1024)
        eac = encoder_concat_forward(pooled, y_context, self.enc_lin)   # (N, encode+output)
        eac = eac.reshape(-1, self.bs, self.encode_size + self.output_size)  # (T, B, D)
        pred, h_n, c_n = lstm_linear_forward(eac, self.h, self.c,
                                             self.lstm_params, self.lin_w, self.lin_b)
        # repackage_hidden == detach from graph
        self.h = jax.lax.stop_gradient(h_n)
        self.c = jax.lax.stop_gradient(c_n)
        self.last_pred = jax.lax.stop_gradient(pred)
        return pred


# ----------------------------- demo -----------------------------

if __name__ == "__main__":
    encode_size = 32
    hidden_size = 32
    num_layers = 2
    seq_len = 4
    bs = 2
    output_size = 4
    H_img = W_img = 16

    model = CNNtoRNNFeedbackPallas(
        encode_size, hidden_size, num_layers, seq_len, bs, output_size,
        use_ground_truth=False, key=jax.random.PRNGKey(0))

    kx, ky = jax.random.split(jax.random.PRNGKey(0))
    x = jax.random.normal(kx, (seq_len * bs, 3, H_img, W_img), F32)
    y_prev = jax.random.normal(ky, (seq_len * bs, output_size), F32)

    pred = model.forward(x, y_prev)
    jax.block_until_ready(pred)
    assert pred.shape == (seq_len * bs, output_size)
    assert bool(jnp.all(jnp.isfinite(pred)))
    print("KERNEL_OK")
</pallas_src>

<mosaic_0001>
module attributes {stable_mosaic.version = 11 : i64} {
  func.func @kernel(%arg0: i32, %arg1: i32, %arg2: memref<1x16x128xbf16, #tpu.memory_space<vmem>>, %arg3: memref<128x512xbf16, #tpu.memory_space<vmem>>, %arg4: memref<1x512xf32, #tpu.memory_space<vmem>>, %arg5: memref<1x1x1024xf32, #tpu.memory_space<vmem>>, %arg6: memref<1x512xf32, #tpu.memory_space<vmem>>, %arg7: memref<1x512xf32, #tpu.memory_space<vmem>>) attributes {dimension_semantics = [#tpu.dimension_semantics<parallel>, #tpu.dimension_semantics<arbitrary>], iteration_bounds = array<i64: 8, 1>, scalar_prefetch = 0 : i64, scratch_operands = 2 : i64, tpu.core_type = #tpu.core_type<tc>, window_params = [{transform_indices = @transform_0, window_bounds = array<i64: 1, 16, 128>}, {pipeline_mode = #tpu.pipeline_mode<synchronous>, transform_indices = @transform_1, window_bounds = array<i64: 128, 512>}, {pipeline_mode = #tpu.pipeline_mode<synchronous>, transform_indices = @transform_2, window_bounds = array<i64: 1, 512>}, {transform_indices = @transform_3, window_bounds = array<i64: 1, 1, 1024>}]} {
    %c0_i32 = arith.constant 0 : i32
    %0 = arith.cmpi eq, %arg1, %c0_i32 : i32
    %1 = arith.extui %0 : i1 to i32
    %c0_i32_0 = arith.constant 0 : i32
    %2 = arith.cmpi ne, %1, %c0_i32_0 : i32
    scf.if %2 {
      %cst_20 = arith.constant 0xFF800000 : f32
      %25 = vector.broadcast %cst_20 : f32 to vector<1x512xf32>
      %c0_21 = arith.constant 0 : index
      %c0_22 = arith.constant 0 : index
      %26 = vector.load %arg6[%c0_21, %c0_22] : memref<1x512xf32, #tpu.memory_space<vmem>>, vector<1x512xf32>
      tpu.vector_store %arg6[%c0_21, %c0_22], %25 {strides = array<i32>} : memref<1x512xf32, #tpu.memory_space<vmem>>, vector<1x512xf32>,
      %cst_23 = arith.constant 0.000000e+00 : f32
      %27 = vector.broadcast %cst_23 : f32 to vector<1x512xf32>
      %c0_24 = arith.constant 0 : index
      %c0_25 = arith.constant 0 : index
      %28 = vector.load %arg7[%c0_24, %c0_25] : memref<1x512xf32, #tpu.memory_space<vmem>>, vector<1x512xf32>
      tpu.vector_store %arg7[%c0_24, %c0_25], %27 {strides = array<i32>} : memref<1x512xf32, #tpu.memory_space<vmem>>, vector<1x512xf32>,
    } else {
    }
    %c0 = arith.constant 0 : index
    %c0_1 = arith.constant 0 : index
    %c0_2 = arith.constant 0 : index
    %3 = vector.load %arg2[%c0, %c0_1, %c0_2] : memref<1x16x128xbf16, #tpu.memory_space<vmem>>, vector<1x16x128xbf16>
    %4 = vector.shape_cast %3 : vector<1x16x128xbf16> to vector<16x128xbf16>
    %c0_3 = arith.constant 0 : index
    %c0_4 = arith.constant 0 : index
    %5 = vector.load %arg3[%c0_3, %c0_4] : memref<128x512xbf16, #tpu.memory_space<vmem>>, vector<128x512xbf16>
    %cst = arith.constant dense<0.000000e+00> : vector<16x512xf32>
    %6 = tpu.matmul %4, %5, %cst {dimension_numbers = #tpu.dot_dimension_numbers<[1], [0], [0], [1], [0, 0, 1, 1], [], []>} : vector<16x128xbf16>, vector<128x512xbf16>, vector<16x512xf32> -> vector<16x512xf32>
    %c0_5 = arith.constant 0 : index
    %c0_6 = arith.constant 0 : index
    %7 = vector.load %arg4[%c0_5, %c0_6] : memref<1x512xf32, #tpu.memory_space<vmem>>, vector<1x512xf32>
    %8 = vector.broadcast %7 : vector<1x512xf32> to vector<16x512xf32>
    %9 = arith.addf %6, %8 : vector<16x512xf32>
    %cst_7 = arith.constant 0.000000e+00 : f32
    %10 = vector.broadcast %cst_7 : f32 to vector<16x512xf32>
    %11 = arith.maximumf %9, %10 : vector<16x512xf32>
    %c0_8 = arith.constant 0 : index
    %c0_9 = arith.constant 0 : index
    %12 = vector.load %arg6[%c0_8, %c0_9] : memref<1x512xf32, #tpu.memory_space<vmem>>, vector<1x512xf32>
    %cst_10 = arith.constant dense<0xFF800000> : vector<512xf32>
    %13 = vector.multi_reduction <maximumf>, %11, %cst_10 [0] : vector<16x512xf32> to vector<512xf32>
    %14 = vector.shape_cast %13 : vector<512xf32> to vector<1x512xf32>
    %15 = arith.maximumf %12, %14 : vector<1x512xf32>
    %c0_11 = arith.constant 0 : index
    %c0_12 = arith.constant 0 : index
    %16 = vector.load %arg6[%c0_11, %c0_12] : memref<1x512xf32, #tpu.memory_space<vmem>>, vector<1x512xf32>
    tpu.vector_store %arg6[%c0_11, %c0_12], %15 {strides = array<i32>} : memref<1x512xf32, #tpu.memory_space<vmem>>, vector<1x512xf32>,
    %c0_13 = arith.constant 0 : index
    %c0_14 = arith.constant 0 : index
    %17 = vector.load %arg7[%c0_13, %c0_14] : memref<1x512xf32, #tpu.memory_space<vmem>>, vector<1x512xf32>
    %cst_15 = arith.constant dense<0.000000e+00> : vector<512xf32>
    %18 = vector.multi_reduction <add>, %11, %cst_15 [0] : vector<16x512xf32> to vector<512xf32>
    %19 = vector.shape_cast %18 : vector<512xf32> to vector<1x512xf32>
    %20 = arith.addf %17, %19 : vector<1x512xf32>
    %c0_16 = arith.constant 0 : index
    %c0_17 = arith.constant 0 : index
    %21 = vector.load %arg7[%c0_16, %c0_17] : memref<1x512xf32, #tpu.memory_space<vmem>>, vector<1x512xf32>
    tpu.vector_store %arg7[%c0_16, %c0_17], %20 {strides = array<i32>} : memref<1x512xf32, #tpu.memory_space<vmem>>, vector<1x512xf32>,
    %c0_i32_18 = arith.constant 0 : i32
    %22 = arith.cmpi eq, %arg1, %c0_i32_18 : i32
    %23 = arith.extui %22 : i1 to i32
    %c0_i32_19 = arith.constant 0 : i32
    %24 = arith.cmpi ne, %23, %c0_i32_19 : i32
    scf.if %24 {
      %c0_20 = arith.constant 0 : index
      %c0_21 = arith.constant 0 : index
      %25 = vector.load %arg6[%c0_20, %c0_21] : memref<1x512xf32, #tpu.memory_space<vmem>>, vector<1x512xf32>
      %c0_22 = arith.constant 0 : index
      %c0_23 = arith.constant 0 : index
      %26 = vector.load %arg7[%c0_22, %c0_23] : memref<1x512xf32, #tpu.memory_space<vmem>>, vector<1x512xf32>
      %cst_24 = arith.constant 6.250000e-02 : f32
      %27 = vector.broadcast %cst_24 : f32 to vector<1x512xf32>
      %28 = arith.mulf %26, %27 : vector<1x512xf32>
      %29 = tpu.concatenate %25, %28 in 1 : vector<1x512xf32>, vector<1x512xf32> -> vector<1x1024xf32>
      %c0_25 = arith.constant 0 : index
      %c0_26 = arith.constant 0 : index
      %c0_27 = arith.constant 0 : index
      %30 = vector.load %arg5[%c0_25, %c0_26, %c0_27] : memref<1x1x1024xf32, #tpu.memory_space<vmem>>, vector<1x1x1024xf32>
      %31 = vector.shape_cast %30 : vector<1x1x1024xf32> to vector<1x1024xf32>
      %32 = vector.shape_cast %29 : vector<1x1024xf32> to vector<1x1x1024xf32>
      tpu.vector_store %arg5[%c0_25, %c0_26, %c0_27], %32 {strides = array<i32>} : memref<1x1x1024xf32, #tpu.memory_space<vmem>>, vector<1x1x1024xf32>,
    } else {
    }
    return
  }
  func.func @transform_0(%arg0: i32, %arg1: i32) -> (i32, i32, i32) {
    %c0_i32 = arith.constant 0 : i32
    %c0_i32_0 = arith.constant 0 : i32
    return %arg0, %arg1, %c0_i32 : i32, i32, i32
  }
  func.func @transform_1(%arg0: i32, %arg1: i32) -> (i32, i32) {
    %c0_i32 = arith.constant 0 : i32
    %c0_i32_0 = arith.constant 0 : i32
    %c0_i32_1 = arith.constant 0 : i32
    return %c0_i32, %c0_i32_0 : i32, i32
  }
  func.func @transform_2(%arg0: i32, %arg1: i32) -> (i32, i32) {
    %c0_i32 = arith.constant 0 : i32
    %c0_i32_0 = arith.constant 0 : i32
    %c0_i32_1 = arith.constant 0 : i32
    return %c0_i32, %c0_i32_0 : i32, i32
  }
  func.func @transform_3(%arg0: i32, %arg1: i32) -> (i32, i32, i32) {
    %c0_i32 = arith.constant 0 : i32
    %c0_i32_0 = arith.constant 0 : i32
    %c0_i32_1 = arith.constant 0 : i32
    return %arg0, %c0_i32, %c0_i32_0 : i32, i32, i32
  }
}

</mosaic_0001>

<llo_original>
// kernel: tpu_custom_call.1
$region0: #{tpu_custom_call.1}
  #allocation0 [shape = 'u32[]', space=smem, size = 0x4, offset = 0x4, fixed_abs, tag = 'smem constant byte address 0x4 - core index']
  #allocation1 [shape = 'u32[144,128]{1,0:T(1,128)}', space=vmem, size = 0x12000, scoped, tag = 'internal scratch']
  #allocation2 [shape = 'f32[1,512]{1,0:T(1,128)}', space=vmem, size = 0x800, scoped, tag = 'scratch operand']
  #allocation3 [shape = 'f32[1,512]{1,0:T(1,128)}', space=vmem, size = 0x800, scoped, tag = 'scratch operand']
  %s0 = inlined_call_operand.hbm [shape: bf16[8,16,128], index: 0, kind: input, shape index: {}]
  %s1 = inlined_call_operand.hbm [shape: bf16[128,512], index: 1, kind: input, shape index: {}]
  %s2 = inlined_call_operand.vmem [shape: f32[1,512], index: 2, kind: input, shape index: {}]
  %s3 = inlined_call_operand.hbm [shape: f32[8,1,1024], index: 3, kind: output, shape index: {}]
  %s4 = sld [smem:[#allocation0]]
  $region61: #{tpu_custom_call.1} parent=0
    _
  %s6 = ssub.s32 1, %s4
  %s7 = scalar_select 0, %s6, %s4
  $region1: #{tpu_custom_call.1} parent=0
    #allocation4 [shape = 'u8[8192]{0}', space=vmem, size = 0x2000, scoped, tag = 'input window, operand 0']
    #allocation5 [shape = 's32[2]{0}', space=sflag, size = 0x8, scoped, tag = 'scoped memory for tpu_custom_call.1']
    #allocation6 [shape = 's32[2]{0}', space=sflag, size = 0x8, scoped, tag = 'scoped memory for tpu_custom_call.1']
    #allocation7 [shape = 'u8[131072]{0}', space=vmem, size = 0x20000, scoped, tag = 'input window, operand 1, single buffered']
    #allocation8 [shape = 's32[1]{0}', space=sflag, size = 0x4, scoped, tag = 'scoped memory for tpu_custom_call.1']
    #allocation9 [shape = 'u8[8192]{0}', space=vmem, size = 0x2000, scoped, tag = 'output window, operand 0']
    %8 = vsyncpa [#allocation5], 0
    %s9 = scalar_lea.sflag [#allocation5], 1
    %10 = vsyncpa %s9, 0
    %11 = vsyncpa [#allocation8], 0
    %12 = vsyncpa [#allocation6], 0
    %s13 = scalar_lea.sflag [#allocation6], 1
    %14 = vsyncpa %s13, 0
    loop: start=0, step=1, limit=10
    $region2: #{tpu_custom_call.1} parent=1 // loop_pre_header
      _
    $region3: #{tpu_custom_call.1} parent=1 // loop_header
      %s16 = sphi 0, %s20
      %p17 = scmp.ge.s32.totalorder %s16, 10
      %s23 = sphi 0, %s35
      %s24 = sphi 0, %s31
      %s25 = sphi 0, %s23
      %s26 = sphi 0, %s24
      %s27 = sphi 0, %s25
      %s28 = sphi 0, %s26
      %s40 = sphi 0, %s42
      %s43 = sphi 0, %s40
      %s44 = sphi 0, %s43
      %s60 = sphi 0, %s44
      %s64 = sphi 0, %s64
      %s66 = sphi 0, %s64
      %s67 = sphi 0, %s66
      %s81 = sphi 0, %s67
      %s85 = sphi 0, %s85
      %s87 = sphi 0, %s85
      %s88 = sphi 0, %s87
      %s102 = sphi 0, %s88
      %s108 = sphi 0, %s110
      %s111 = sphi 0, %s108
      %s112 = sphi 0, %s111
      %s128 = sphi 0, %s112
    $region4: #{tpu_custom_call.1} parent=1 // loop_header_branch
      %19 = sbr.rel (%p17) target = $region8
    $region5: #{tpu_custom_call.1} parent=1 // loop_body
      %s21 = ssub.s32 %s16, 1
      %s22 = ssub.s32 %s16, 2
      %s29 = sadd.s32 1, %s24
      %p30 = scmp.ge.s32.totalorder %s29, 1
      %s31 = scalar_select %p30, 0, %s29
      %s32 = sadd.s32 1, %s23
      %s33 = scalar_select %p30, %s32, %s23
      %p34 = scmp.ge.s32.totalorder %s33, 8
      %s35 = scalar_select %p34, 0, %s33
      %s36 = ssub.s32 %s23, %s35
      %s37 = ssub.s32 %s24, %s31
      %s38 = sor.u32 %s36, %s37
      %p39 = scmp.eq.s32.totalorder %s38, 0
      %s41 = sadd.s32 %s40, 1
      %s42 = scalar_select %p39, %s40, %s41
      %p45 = pneg %p39
      %p46 = scmp.eq.s32.totalorder %s16, 7
      %p47 = por %p45, %p46
      %p48 = scmp.ne.s32.totalorder %s40, %s43
      %p49 = scmp.eq.s32.totalorder %s16, 0
      %p50 = por %p48, %p49
      %p51 = scmp.ne.s32.totalorder %s40, %s43
      %p52 = scmp.eq.s32.totalorder %s21, 7
      %p53 = por %p51, %p52
      %p54 = scmp.ne.s32.totalorder %s43, %s44
      %p55 = scmp.eq.s32.totalorder %s21, 0
      %p56 = por %p54, %p55
      %p57 = scmp.ne.s32.totalorder %s43, %s44
      %p58 = scmp.eq.s32.totalorder %s22, 7
      %p59 = por %p57, %p58
      %p61 = scmp.ne.s32.totalorder %s44, %s60
      %p62 = scmp.eq.s32.totalorder %s22, 0
      %p63 = por %p61, %p62
      %s65 = sadd.s32 %s64, 1
      %p68 = scmp.eq.s32.totalorder %s16, 7
      %p69 = scmp.ne.s32.totalorder %s64, %s66
      %p70 = scmp.eq.s32.totalorder %s16, 0
      %p71 = por %p69, %p70
      %p72 = scmp.ne.s32.totalorder %s64, %s66
      %p73 = scmp.eq.s32.totalorder %s21, 7
      %p74 = por %p72, %p73
      %p75 = scmp.ne.s32.totalorder %s66, %s67
      %p76 = scmp.eq.s32.totalorder %s21, 0
      %p77 = por %p75, %p76
      %p78 = scmp.ne.s32.totalorder %s66, %s67
      %p79 = scmp.eq.s32.totalorder %s22, 7
      %p80 = por %p78, %p79
      %p82 = scmp.ne.s32.totalorder %s67, %s81
      %p83 = scmp.eq.s32.totalorder %s22, 0
      %p84 = por %p82, %p83
      %s86 = sadd.s32 %s85, 1
      %p89 = scmp.eq.s32.totalorder %s16, 7
      %p90 = scmp.ne.s32.totalorder %s85, %s87
      %p91 = scmp.eq.s32.totalorder %s16, 0
      %p92 = por %p90, %p91
      %p93 = scmp.ne.s32.totalorder %s85, %s87
      %p94 = scmp.eq.s32.totalorder %s21, 7
      %p95 = por %p93, %p94
      %p96 = scmp.ne.s32.totalorder %s87, %s88
      %p97 = scmp.eq.s32.totalorder %s21, 0
      %p98 = por %p96, %p97
      %p99 = scmp.ne.s32.totalorder %s87, %s88
      %p100 = scmp.eq.s32.totalorder %s22, 7
      %p101 = por %p99, %p100
      %p103 = scmp.ne.s32.totalorder %s88, %s102
      %p104 = scmp.eq.s32.totalorder %s22, 0
      %p105 = por %p103, %p104
      %s106 = ssub.s32 %s23, %s35
      %p107 = scmp.eq.s32.totalorder %s106, 0
      %s109 = sadd.s32 %s108, 1
      %s110 = scalar_select %p107, %s108, %s109
      %p113 = pneg %p107
      %p114 = scmp.eq.s32.totalorder %s16, 7
      %p115 = por %p113, %p114
      %p116 = scmp.ne.s32.totalorder %s108, %s111
      %p117 = scmp.eq.s32.totalorder %s16, 0
      %p118 = por %p116, %p117
      %p119 = scmp.ne.s32.totalorder %s108, %s111
      %p120 = scmp.eq.s32.totalorder %s21, 7
      %p121 = por %p119, %p120
      %p122 = scmp.ne.s32.totalorder %s111, %s112
      %p123 = scmp.eq.s32.totalorder %s21, 0
      %p124 = por %p122, %p123
      %p125 = scmp.ne.s32.totalorder %s111, %s112
      %p126 = scmp.eq.s32.totalorder %s22, 7
      %p127 = por %p125, %p126
      %p129 = scmp.ne.s32.totalorder %s112, %s128
      %p130 = scmp.eq.s32.totalorder %s22, 0
      %p131 = por %p129, %p130
      %p132 = scmp.le.s32.totalorder 1, %s16
      %p133 = scmp.lt.s32.totalorder %s16, 9
      %p134 = pnand %p132, %p133
      %p135 = pneg %p134
      // Predicated region
      $region9: #{tpu_custom_call.1} parent=5 // pred_check
        _
      $region10: #{tpu_custom_call.1} parent=5 // pred_check_branch
        %137 = sbr.rel (%p134) target = $region12
      $region11: #{tpu_custom_call.1} parent=5 // pred_region
        %s138 = ssub.s32 %s16, 1
        // Predicated region
        $region13: #{tpu_custom_call.1} parent=11 // pred_check
          %p139 = pneg %p77
        $region14: #{tpu_custom_call.1} parent=11 // pred_check_branch
          %141 = sbr.rel (%p139) target = $region16
        $region15: #{tpu_custom_call.1} parent=11 // pred_region
          %s143 = ssub.s32 4096, 4096
          %144 = vsyncadd [#allocation8], %s143
          %s145 = sshll.u32 [#allocation7], 4
          %s146 = int_to_ptr.vmem [resolvable:$true] %s145
          %151 = dma.hbm_to_vmem [thread:$0]  %s1, 4096, %s146, [#allocation8], 256, 256, 16
        $region16: #{tpu_custom_call.1} parent=11 // pred_fallthru
          _
        // Predicated region
        $region17: #{tpu_custom_call.1} parent=11 // pred_check
          %p152 = pneg %p98
        $region18: #{tpu_custom_call.1} parent=11 // pred_check_branch
          %154 = sbr.rel (%p152) target = $region20
        $region19: #{tpu_custom_call.1} parent=11 // pred_region
          _
        $region20: #{tpu_custom_call.1} parent=11 // pred_fallthru
          _
      $region12: #{tpu_custom_call.1} parent=5 // pred_fallthru
        _
      %p155 = scmp.lt.s32.totalorder %s16, 8
      // Predicated region
      $region21: #{tpu_custom_call.1} parent=5 // pred_check
        %p156 = pneg %p155
      $region22: #{tpu_custom_call.1} parent=5 // pred_check_branch
        %158 = sbr.rel (%p156) target = $region24
      $region23: #{tpu_custom_call.1} parent=5 // pred_region
        // Predicated region
        $region25: #{tpu_custom_call.1} parent=23 // pred_check
          %p159 = pneg %p50
        $region26: #{tpu_custom_call.1} parent=23 // pred_check_branch
          %161 = sbr.rel (%p159) target = $region28
        $region27: #{tpu_custom_call.1} parent=23 // pred_region
          %s162 = sand.u32 %s40, 1
          %s163 = scalar_lea.sflag [#allocation5], %s162
          %s164 = sand.u32 %s40, 1
          %s165 = smul.addr %s164, 8
          %s166 = scalar_lea.vmem [#allocation4], %s165
          %s167 = smul.u32 2, %s24
          %s169 = ssub.s32 128, 128
          %170 = vsyncadd %s163, %s169
          %s171 = smul.addr %s23, 2
          %s172 = sadd.s32 %s167, %s171
          %s173 = smul.addr %s172, 64
          %s174 = scalar_lea.hbm %s0, %s173
          %s175 = sshll.u32 %s166, 4
          %s176 = int_to_ptr.vmem [resolvable:$true] %s175
          %181 = dma.hbm_to_vmem [thread:$0]  %s174, 128, %s176, %s163, 64, 64, 4
        $region28: #{tpu_custom_call.1} parent=23 // pred_fallthru
          _
      $region24: #{tpu_custom_call.1} parent=5 // pred_fallthru
        _
      %p182 = scmp.le.s32.totalorder 1, %s16
      %p183 = scmp.lt.s32.totalorder %s16, 9
      %p184 = pnand %p182, %p183
      %p185 = pneg %p184
      // Predicated region
      $region29: #{tpu_custom_call.1} parent=5 // pred_check
        _
      $region30: #{tpu_custom_call.1} parent=5 // pred_check_branch
        %187 = sbr.rel (%p184) target = $region32
      $region31: #{tpu_custom_call.1} parent=5 // pred_region
        %s188 = ssub.s32 %s16, 1
        %s189 = sand.u32 %s43, 1
        %s190 = scalar_lea.sflag [#allocation5], %s189
        %s191 = sand.u32 %s43, 1
        %s192 = smul.addr %s191, 8
        %s193 = scalar_lea.vmem [#allocation4], %s192
        // Predicated region
        $region33: #{tpu_custom_call.1} parent=31 // pred_check
          %p194 = pneg %p56
        $region34: #{tpu_custom_call.1} parent=31 // pred_check_branch
          %196 = sbr.rel (%p194) target = $region36
        $region35: #{tpu_custom_call.1} parent=31 // pred_region
          %197 = dma.done %s190, 128
        $region36: #{tpu_custom_call.1} parent=31 // pred_fallthru
          _
        // Predicated region
        $region37: #{tpu_custom_call.1} parent=31 // pred_check
          %p198 = pneg %p77
        $region38: #{tpu_custom_call.1} parent=31 // pred_check_branch
          %200 = sbr.rel (%p198) target = $region40
        $region39: #{tpu_custom_call.1} parent=31 // pred_region
          %201 = dma.done [#allocation8], 4096
        $region40: #{tpu_custom_call.1} parent=31 // pred_fallthru
          _
        %s202 = sand.u32 %s43, 1
        %s203 = scalar_lea.sflag [#allocation5], %s202
        %s204 = sand.u32 %s43, 1
        %s205 = smul.addr %s204, 8
        %s206 = scalar_lea.vmem [#allocation4], %s205
        %p207 = pneg %p56
        %p208 = pneg %p53
        %p209 = pneg %p77
        %p210 = pneg %p74
        %p211 = pneg %p98
        %p212 = pneg %p95
        %p213 = pneg %p124
        %p214 = pneg %p121
        %s215 = sand.u32 %s111, 1
        %s216 = scalar_lea.sflag [#allocation6], %s215
        %s217 = sand.u32 %s111, 1
        %s218 = smul.addr %s217, 8
        %s219 = scalar_lea.vmem [#allocation9], %s218
        %s220 = smul.u32 2, %s26
        %p222 = scmp.eq.s32.totalorder %s26, 0
        // Predicated region
        $region41: #{tpu_custom_call.1} parent=31 // pred_check
          %p223 = pneg %p222
        $region42: #{tpu_custom_call.1} parent=31 // pred_check_branch
          %225 = sbr.rel (%p223) target = $region44
        $region43: #{tpu_custom_call.1} parent=31 // pred_region
          %v226 = vlaneseq
          %vm227 = vcmp.ge.s32.totalorder %v226, 0
          %vm228 = vcmp.lt.s32.totalorder %v226, 512
          %vm229 = vmand %vm227, %vm228
          %230 = vst.msk [vmem:[#allocation2] sm:$0xf] %vm229, -inf
          %231 = vst.msk [vmem:[#allocation3] sm:$0xf] %vm229, 0.0
        $region44: #{tpu_custom_call.1} parent=31 // pred_fallthru
          _
        %v232 = vld [vmem:[%s193] sm:$0xf]
        %v233 = vld [vmem:[%s193 + $0x4] sm:$0xf]
        %v234 = vld [vmem:[#allocation7] sm:$0xff]
        %v235 = vld [vmem:[#allocation7 + $0x8] sm:$0xff]
        %v236 = vld [vmem:[#allocation7 + $0x10] sm:$0xff]
        %v237 = vld [vmem:[#allocation7 + $0x18] sm:$0xff]
        %v238 = vld [vmem:[#allocation7 + $0x20] sm:$0xff]
        %v239 = vld [vmem:[#allocation7 + $0x28] sm:$0xff]
        %v240 = vld [vmem:[#allocation7 + $0x30] sm:$0xff]
        %v241 = vld [vmem:[#allocation7 + $0x38] sm:$0xff]
        %v242 = vld [vmem:[#allocation7 + $0x40] sm:$0xff]
        %v243 = vld [vmem:[#allocation7 + $0x48] sm:$0xff]
        %v244 = vld [vmem:[#allocation7 + $0x50] sm:$0xff]
        %v245 = vld [vmem:[#allocation7 + $0x58] sm:$0xff]
        %v246 = vld [vmem:[#allocation7 + $0x60] sm:$0xff]
        %v247 = vld [vmem:[#allocation7 + $0x68] sm:$0xff]
        %v248 = vld [vmem:[#allocation7 + $0x70] sm:$0xff]
        %v249 = vld [vmem:[#allocation7 + $0x78] sm:$0xff]
        %v250 = vld [vmem:[#allocation7 + $0x80] sm:$0xff]
        %v251 = vld [vmem:[#allocation7 + $0x88] sm:$0xff]
        %v252 = vld [vmem:[#allocation7 + $0x90] sm:$0xff]
        %v253 = vld [vmem:[#allocation7 + $0x98] sm:$0xff]
        %v254 = vld [vmem:[#allocation7 + $0xa0] sm:$0xff]
        %v255 = vld [vmem:[#allocation7 + $0xa8] sm:$0xff]
        %v256 = vld [vmem:[#allocation7 + $0xb0] sm:$0xff]
        %v257 = vld [vmem:[#allocation7 + $0xb8] sm:$0xff]
        %v258 = vld [vmem:[#allocation7 + $0xc0] sm:$0xff]
        %v259 = vld [vmem:[#allocation7 + $0xc8] sm:$0xff]
        %v260 = vld [vmem:[#allocation7 + $0xd0] sm:$0xff]
        %v261 = vld [vmem:[#allocation7 + $0xd8] sm:$0xff]
        %v262 = vld [vmem:[#allocation7 + $0xe0] sm:$0xff]
        %v263 = vld [vmem:[#allocation7 + $0xe8] sm:$0xff]
        %v264 = vld [vmem:[#allocation7 + $0xf0] sm:$0xff]
        %v265 = vld [vmem:[#allocation7 + $0xf8] sm:$0xff]
        %v266 = vld [vmem:[%s2] sm:$0xf]
        %v268 = vlaneseq
        %v269 = vshrl.u32 %v268, 7
        %v270 = vsub.s32 0, %v269
        %v271 = vrot.slane %v266, %v270
        %v272 = vlaneseq
        %v273 = vshrl.u32 %v272, 7
        %v274 = vsub.s32 1, %v273
        %v275 = vrot.slane %v266, %v274
        %v276 = vlaneseq
        %v277 = vshrl.u32 %v276, 7
        %v278 = vsub.s32 2, %v277
        %v279 = vrot.slane %v266, %v278
        %v280 = vlaneseq
        %v281 = vshrl.u32 %v280, 7
        %v282 = vsub.s32 3, %v281
        %v283 = vrot.slane %v266, %v282
        %v290 = vunpack.c.l.b16 %v232
        %v291 = vunpack.c.l.b16 %v233
        %v292 = vpack.c.b16 %v291, %v290
        %v326 = vunpack.c.l.b16 %v234
        %v327 = vunpack.c.h.b16 %v234
        %v328 = vunpack.c.l.b16 %v235
        %v329 = vunpack.c.h.b16 %v235
        %v330 = vunpack.c.l.b16 %v236
        %v331 = vunpack.c.h.b16 %v236
        %v332 = vunpack.c.l.b16 %v237
        %v333 = vunpack.c.h.b16 %v237
        %v334 = vunpack.c.l.b16 %v238
        %v335 = vunpack.c.h.b16 %v238
        %v336 = vunpack.c.l.b16 %v239
        %v337 = vunpack.c.h.b16 %v239
        %v338 = vunpack.c.l.b16 %v240
        %v339 = vunpack.c.h.b16 %v240
        %v340 = vunpack.c.l.b16 %v241
        %v341 = vunpack.c.h.b16 %v241
        %v342 = vunpack.c.l.b16 %v242
        %v343 = vunpack.c.h.b16 %v242
        %v344 = vunpack.c.l.b16 %v243
        %v345 = vunpack.c.h.b16 %v243
        %v346 = vunpack.c.l.b16 %v244
        %v347 = vunpack.c.h.b16 %v244
        %v348 = vunpack.c.l.b16 %v245
        %v349 = vunpack.c.h.b16 %v245
        %v350 = vunpack.c.l.b16 %v246
        %v351 = vunpack.c.h.b16 %v246
        %v352 = vunpack.c.l.b16 %v247
        %v353 = vunpack.c.h.b16 %v247
        %v354 = vunpack.c.l.b16 %v248
        %v355 = vunpack.c.h.b16 %v248
        %v356 = vunpack.c.l.b16 %v249
        %v357 = vunpack.c.h.b16 %v249
        %v358 = vunpack.c.l.b16 %v250
        %v359 = vunpack.c.h.b16 %v250
        %v360 = vunpack.c.l.b16 %v251
        %v361 = vunpack.c.h.b16 %v251
        %v362 = vunpack.c.l.b16 %v252
        %v363 = vunpack.c.h.b16 %v252
        %v364 = vunpack.c.l.b16 %v253
        %v365 = vunpack.c.h.b16 %v253
        %v366 = vunpack.c.l.b16 %v254
        %v367 = vunpack.c.h.b16 %v254
        %v368 = vunpack.c.l.b16 %v255
        %v369 = vunpack.c.h.b16 %v255
        %v370 = vunpack.c.l.b16 %v256
        %v371 = vunpack.c.h.b16 %v256
        %v372 = vunpack.c.l.b16 %v257
        %v373 = vunpack.c.h.b16 %v257
        %v374 = vunpack.c.l.b16 %v258
        %v375 = vunpack.c.h.b16 %v258
        %v376 = vunpack.c.l.b16 %v259
        %v377 = vunpack.c.h.b16 %v259
        %v378 = vunpack.c.l.b16 %v260
        %v379 = vunpack.c.h.b16 %v260
        %v380 = vunpack.c.l.b16 %v261
        %v381 = vunpack.c.h.b16 %v261
        %v382 = vunpack.c.l.b16 %v262
        %v383 = vunpack.c.h.b16 %v262
        %v384 = vunpack.c.l.b16 %v263
        %v385 = vunpack.c.h.b16 %v263
        %v386 = vunpack.c.l.b16 %v264
        %v387 = vunpack.c.h.b16 %v264
        %v388 = vunpack.c.l.b16 %v265
        %v389 = vunpack.c.h.b16 %v265
        %v390 = vpack.c.b16 %v330, %v326
        %v391 = vpack.c.b16 %v331, %v327
        %v392 = vpack.c.b16 %v332, %v328
        %v393 = vpack.c.b16 %v333, %v329
        %v394 = vpack.c.b16 %v338, %v334
        %v395 = vpack.c.b16 %v339, %v335
        %v396 = vpack.c.b16 %v340, %v336
        %v397 = vpack.c.b16 %v341, %v337
        %v398 = vpack.c.b16 %v346, %v342
        %v399 = vpack.c.b16 %v347, %v343
        %v400 = vpack.c.b16 %v348, %v344
        %v401 = vpack.c.b16 %v349, %v345
        %v402 = vpack.c.b16 %v354, %v350
        %v403 = vpack.c.b16 %v355, %v351
        %v404 = vpack.c.b16 %v356, %v352
        %v405 = vpack.c.b16 %v357, %v353
        %v406 = vpack.c.b16 %v362, %v358
        %v407 = vpack.c.b16 %v363, %v359
        %v408 = vpack.c.b16 %v364, %v360
        %v409 = vpack.c.b16 %v365, %v361
        %v410 = vpack.c.b16 %v370, %v366
        %v411 = vpack.c.b16 %v371, %v367
        %v412 = vpack.c.b16 %v372, %v368
        %v413 = vpack.c.b16 %v373, %v369
        %v414 = vpack.c.b16 %v378, %v374
        %v415 = vpack.c.b16 %v379, %v375
        %v416 = vpack.c.b16 %v380, %v376
        %v417 = vpack.c.b16 %v381, %v377
        %v418 = vpack.c.b16 %v386, %v382
        %v419 = vpack.c.b16 %v387, %v383
        %v420 = vpack.c.b16 %v388, %v384
        %v421 = vpack.c.b16 %v389, %v385
        %454 = vmatprep.subr.bf16.mxu0 %v391
        %455 = vmatpush1.bf16.msra.mxu0 %v390
        %456 = vmatprep.subr.bf16.mxu0 %v395
        %457 = vmatpush1.bf16.msra.mxu0 %v394
        %458 = vmatprep.subr.bf16.mxu0 %v399
        %459 = vmatpush1.bf16.msra.mxu0 %v398
        %460 = vmatprep.subr.bf16.mxu0 %v403
        %461 = vmatpush1.bf16.msra.mxu0 %v402
        %462 = vmatprep.subr.bf16.mxu0 %v407
        %463 = vmatpush1.bf16.msra.mxu0 %v406
        %464 = vmatprep.subr.bf16.mxu0 %v411
        %465 = vmatpush1.bf16.msra.mxu0 %v410
        %466 = vmatprep.subr.bf16.mxu0 %v415
        %467 = vmatpush1.bf16.msra.mxu0 %v414
        %468 = vmatprep.subr.bf16.mxu0 %v419
        %469 = vmatpush1.bf16.msra.mxu0 %v418
        %470 = vmatprep.subr.bf16.mxu0 0
        %471 = vmatpush1.bf16.msra.mxu0 0
        %472 = vmatprep.subr.bf16.mxu0 0
        %473 = vmatpush1.bf16.msra.mxu0 0
        %474 = vmatprep.subr.bf16.mxu0 0
        %475 = vmatpush1.bf16.msra.mxu0 0
        %476 = vmatprep.subr.bf16.mxu0 0
        %477 = vmatpush1.bf16.msra.mxu0 0
        %478 = vmatprep.subr.bf16.mxu0 0
        %479 = vmatpush1.bf16.msra.mxu0 0
        %480 = vmatprep.subr.bf16.mxu0 0
        %481 = vmatpush1.bf16.msra.mxu0 0
        %482 = vmatprep.subr.bf16.mxu0 0
        %483 = vmatpush1.bf16.msra.mxu0 0
        %484 = vmatprep.subr.bf16.mxu0 0
        %485 = vmatpush1.bf16.msra.mxu0 0
        %486 = vmatprep.mubr.bf16.mxu0 0
        %487 = vmatmul.mubr.bf16.gmra.mrb[0].mxu0 %v292
        %v488 = vpop.f32.mrb[0].mxu0
        %v489 = vadd.f32 %v271, %v488
        %v490 = vpop.f32.mrb[0].mxu0
        %v491 = vadd.f32 %v275, %v490
        %v492 = vpop.f32.mrb[0].mxu0
        %v493 = vadd.f32 %v271, %v492
        %v494 = vpop.f32.mrb[0].mxu0
        %v495 = vadd.f32 %v275, %v494
        %496 = vdwg.mxu0
        %497 = vmatprep.subr.bf16.mxu0 %v393
        %498 = vmatpush1.bf16.msra.mxu0 %v392
        %499 = vmatprep.subr.bf16.mxu0 %v397
        %500 = vmatpush1.bf16.msra.mxu0 %v396
        %501 = vmatprep.subr.bf16.mxu0 %v401
        %502 = vmatpush1.bf16.msra.mxu0 %v400
        %503 = vmatprep.subr.bf16.mxu0 %v405
        %504 = vmatpush1.bf16.msra.mxu0 %v404
        %505 = vmatprep.subr.bf16.mxu0 %v409
        %506 = vmatpush1.bf16.msra.mxu0 %v408
        %507 = vmatprep.subr.bf16.mxu0 %v413
        %508 = vmatpush1.bf16.msra.mxu0 %v412
        %509 = vmatprep.subr.bf16.mxu0 %v417
        %510 = vmatpush1.bf16.msra.mxu0 %v416
        %511 = vmatprep.subr.bf16.mxu0 %v421
        %512 = vmatpush1.bf16.msra.mxu0 %v420
        %513 = vmatprep.subr.bf16.mxu0 0
        %514 = vmatpush1.bf16.msra.mxu0 0
        %515 = vmatprep.subr.bf16.mxu0 0
        %516 = vmatpush1.bf16.msra.mxu0 0
        %517 = vmatprep.subr.bf16.mxu0 0
        %518 = vmatpush1.bf16.msra.mxu0 0
        %519 = vmatprep.subr.bf16.mxu0 0
        %520 = vmatpush1.bf16.msra.mxu0 0
        %521 = vmatprep.subr.bf16.mxu0 0
        %522 = vmatpush1.bf16.msra.mxu0 0
        %523 = vmatprep.subr.bf16.mxu0 0
        %524 = vmatpush1.bf16.msra.mxu0 0
        %525 = vmatprep.subr.bf16.mxu0 0
        %526 = vmatpush1.bf16.msra.mxu0 0
        %527 = vmatprep.subr.bf16.mxu0 0
        %528 = vmatpush1.bf16.msra.mxu0 0
        %529 = vmatprep.mubr.bf16.mxu0 0
        %530 = vmatmul.mubr.bf16.gmra.mrb[0].mxu0 %v292
        %v531 = vpop.f32.mrb[0].mxu0
        %v532 = vadd.f32 %v279, %v531
        %v533 = vpop.f32.mrb[0].mxu0
        %v534 = vadd.f32 %v283, %v533
        %v535 = vpop.f32.mrb[0].mxu0
        %v536 = vadd.f32 %v279, %v535
        %v537 = vpop.f32.mrb[0].mxu0
        %v538 = vadd.f32 %v283, %v537
        %539 = vdwg.mxu0
        %v540 = vmax.f32 %v489, 0.0
        %v541 = vmax.f32 %v491, 0.0
        %v542 = vmax.f32 %v532, 0.0
        %v543 = vmax.f32 %v534, 0.0
        %v544 = vmax.f32 %v493, 0.0
        %v545 = vmax.f32 %v495, 0.0
        %v546 = vmax.f32 %v536, 0.0
        %v547 = vmax.f32 %v538, 0.0
        %v548 = vld [vmem:[#allocation2] sm:$0xf]
        %v549 = vmax.f32 %v540, %v544
        %v550 = vrot.slane %v549, 4
        %v551 = vmax.f32 %v549, %v550
        %v552 = vrot.slane %v551, 2
        %v553 = vmax.f32 %v551, %v552
        %v554 = vrot.slane %v553, 1
        %v555 = vmax.f32 %v553, %v554
        %v556 = vmax.f32 %v541, %v545
        %v557 = vrot.slane %v556, 4
        %v558 = vmax.f32 %v556, %v557
        %v559 = vrot.slane %v558, 2
        %v560 = vmax.f32 %v558, %v559
        %v561 = vrot.slane %v560, 1
        %v562 = vmax.f32 %v560, %v561
        %v563 = vmax.f32 %v542, %v546
        %v564 = vrot.slane %v563, 4
        %v565 = vmax.f32 %v563, %v564
        %v566 = vrot.slane %v565, 2
        %v567 = vmax.f32 %v565, %v566
        %v568 = vrot.slane %v567, 1
        %v569 = vmax.f32 %v567, %v568
        %v570 = vmax.f32 %v543, %v547
        %v571 = vrot.slane %v570, 4
        %v572 = vmax.f32 %v570, %v571
        %v573 = vrot.slane %v572, 2
        %v574 = vmax.f32 %v572, %v573
        %v575 = vrot.slane %v574, 1
        %v576 = vmax.f32 %v574, %v575
        %v581 = vcombine.low %v555, %v562
        %v582 = vcombine.low %v569, %v576
        %v584 = vunpack.c.l.s4 1966171168
        %v585 = vunpack.c.0.s8 %v584
        %v586 = vlaneseq
        %v587 = vshrl.u32 %v586, 7
        %v588 = vsub.s32 %v585, %v587
        %v589 = vrot.slane %v581, %v588
        %v591 = vunpack.c.l.s4 1966171168
        %v592 = vunpack.c.0.s8 %v591
        %v593 = vlaneseq
        %v594 = vshrl.u32 %v593, 7
        %v595 = vsub.s32 %v592, %v594
        %v596 = vrot.slane %v582, %v595
        %v597 = vcombine.low %v589, %v596
        %v599 = vunpack.c.l.s4 1966171168
        %v600 = vunpack.c.0.s8 %v599
        %v601 = vlaneseq
        %v602 = vshrl.u32 %v601, 7
        %v603 = vsub.s32 %v600, %v602
        %v604 = vrot.slane %v597, %v603
        %v606 = vmax.f32 %v548, %v604
        %v607 = vlaneseq
        %vm608 = vcmp.ge.s32.totalorder %v607, 0
        %vm609 = vcmp.lt.s32.totalorder %v607, 512
        %vm610 = vmand %vm608, %vm609
        %611 = vst.msk [vmem:[#allocation2] sm:$0xf] %vm610, %v606
        %v612 = vld [vmem:[#allocation3] sm:$0xf]
        %v613 = vadd.f32 %v540, %v544
        %v614 = vrot.slane %v613, 4
        %v615 = vadd.f32 %v613, %v614
        %v616 = vrot.slane %v615, 2
        %v617 = vadd.f32 %v615, %v616
        %v618 = vrot.slane %v617, 1
        %v619 = vadd.f32 %v617, %v618
        %v620 = vadd.f32 %v541, %v545
        %v621 = vrot.slane %v620, 4
        %v622 = vadd.f32 %v620, %v621
        %v623 = vrot.slane %v622, 2
        %v624 = vadd.f32 %v622, %v623
        %v625 = vrot.slane %v624, 1
        %v626 = vadd.f32 %v624, %v625
        %v627 = vadd.f32 %v542, %v546
        %v628 = vrot.slane %v627, 4
        %v629 = vadd.f32 %v627, %v628
        %v630 = vrot.slane %v629, 2
        %v631 = vadd.f32 %v629, %v630
        %v632 = vrot.slane %v631, 1
        %v633 = vadd.f32 %v631, %v632
        %v634 = vadd.f32 %v543, %v547
        %v635 = vrot.slane %v634, 4
        %v636 = vadd.f32 %v634, %v635
        %v637 = vrot.slane %v636, 2
        %v638 = vadd.f32 %v636, %v637
        %v639 = vrot.slane %v638, 1
        %v640 = vadd.f32 %v638, %v639
        %v645 = vcombine.low %v619, %v626
        %v646 = vcombine.low %v633, %v640
        %v648 = vunpack.c.l.s4 1966171168
        %v649 = vunpack.c.0.s8 %v648
        %v650 = vlaneseq
        %v651 = vshrl.u32 %v650, 7
        %v652 = vsub.s32 %v649, %v651
        %v653 = vrot.slane %v645, %v652
        %v655 = vunpack.c.l.s4 1966171168
        %v656 = vunpack.c.0.s8 %v655
        %v657 = vlaneseq
        %v658 = vshrl.u32 %v657, 7
        %v659 = vsub.s32 %v656, %v658
        %v660 = vrot.slane %v646, %v659
        %v661 = vcombine.low %v653, %v660
        %v663 = vunpack.c.l.s4 1966171168
        %v664 = vunpack.c.0.s8 %v663
        %v665 = vlaneseq
        %v666 = vshrl.u32 %v665, 7
        %v667 = vsub.s32 %v664, %v666
        %v668 = vrot.slane %v661, %v667
        %v670 = vadd.f32 %v612, %v668
        %671 = vst.msk [vmem:[#allocation3] sm:$0xf] %vm610, %v670
        // Predicated region
        $region45: #{tpu_custom_call.1} parent=31 // pred_check
          %p672 = pneg %p222
        $region46: #{tpu_custom_call.1} parent=31 // pred_check_branch
          %674 = sbr.rel (%p672) target = $region48
        $region47: #{tpu_custom_call.1} parent=31 // pred_region
          %v675 = vld [vmem:[#allocation2] sm:$0xf]
          %v676 = vld [vmem:[#allocation3] sm:$0xf]
          %v677 = vmul.f32 %v676, 0.0625
          %v679 = vlaneseq
          %v680 = vshrl.u32 %v679, 7
          %v681 = vsub.s32 0, %v680
          %v682 = vrot.slane %v675, %v681
          %v683 = vlaneseq
          %v684 = vshrl.u32 %v683, 7
          %v685 = vsub.s32 1, %v684
          %v686 = vrot.slane %v675, %v685
          %v687 = vlaneseq
          %v688 = vshrl.u32 %v687, 7
          %v689 = vsub.s32 2, %v688
          %v690 = vrot.slane %v675, %v689
          %v691 = vlaneseq
          %v692 = vshrl.u32 %v691, 7
          %v693 = vsub.s32 3, %v692
          %v694 = vrot.slane %v675, %v693
          %v696 = vlaneseq
          %v697 = vshrl.u32 %v696, 7
          %v698 = vsub.s32 0, %v697
          %v699 = vrot.slane %v677, %v698
          %v700 = vlaneseq
          %v701 = vshrl.u32 %v700, 7
          %v702 = vsub.s32 1, %v701
          %v703 = vrot.slane %v677, %v702
          %v704 = vlaneseq
          %v705 = vshrl.u32 %v704, 7
          %v706 = vsub.s32 2, %v705
          %v707 = vrot.slane %v677, %v706
          %v708 = vlaneseq
          %v709 = vshrl.u32 %v708, 7
          %v710 = vsub.s32 3, %v709
          %v711 = vrot.slane %v677, %v710
          %v712 = vcombine.low %v682, %v686
          %v713 = vcombine.low %v690, %v694
          %v714 = vcombine.low %v699, %v703
          %v715 = vcombine.low %v707, %v711
          %v717 = vunpack.c.l.s4 1966171168
          %v718 = vunpack.c.0.s8 %v717
          %v719 = vlaneseq
          %v720 = vshrl.u32 %v719, 7
          %v721 = vsub.s32 %v718, %v720
          %v722 = vrot.slane %v712, %v721
          %v724 = vunpack.c.l.s4 1966171168
          %v725 = vunpack.c.0.s8 %v724
          %v726 = vlaneseq
          %v727 = vshrl.u32 %v726, 7
          %v728 = vsub.s32 %v725, %v727
          %v729 = vrot.slane %v713, %v728
          %v731 = vunpack.c.l.s4 1966171168
          %v732 = vunpack.c.0.s8 %v731
          %v733 = vlaneseq
          %v734 = vshrl.u32 %v733, 7
          %v735 = vsub.s32 %v732, %v734
          %v736 = vrot.slane %v714, %v735
          %v738 = vunpack.c.l.s4 1966171168
          %v739 = vunpack.c.0.s8 %v738
          %v740 = vlaneseq
          %v741 = vshrl.u32 %v740, 7
          %v742 = vsub.s32 %v739, %v741
          %v743 = vrot.slane %v715, %v742
          %v744 = vcombine.low %v722, %v729
          %v745 = vcombine.low %v736, %v743
          %v747 = vunpack.c.l.s4 1966171168
          %v748 = vunpack.c.0.s8 %v747
          %v749 = vlaneseq
          %v750 = vshrl.u32 %v749, 7
          %v751 = vsub.s32 %v748, %v750
          %v752 = vrot.slane %v744, %v751
          %v754 = vunpack.c.l.s4 1966171168
          %v755 = vunpack.c.0.s8 %v754
          %v756 = vlaneseq
          %v757 = vshrl.u32 %v756, 7
          %v758 = vsub.s32 %v755, %v757
          %v759 = vrot.slane %v745, %v758
          %v760 = vcombine.low %v752, %v759
          %762 = vst [vmem:[%s219] sm:$0xff] %v760
        $region48: #{tpu_custom_call.1} parent=31 // pred_fallthru
          _
        %s763 = sand.u32 %s111, 1
        %s764 = scalar_lea.sflag [#allocation6], %s763
        %s765 = sand.u32 %s111, 1
        %s766 = smul.addr %s765, 8
        %s767 = scalar_lea.vmem [#allocation9], %s766
        // Predicated region
        $region49: #{tpu_custom_call.1} parent=31 // pred_check
          %p768 = pneg %p121
        $region50: #{tpu_custom_call.1} parent=31 // pred_check_branch
          %770 = sbr.rel (%p768) target = $region52
        $region51: #{tpu_custom_call.1} parent=31 // pred_region
          %s772 = ssub.s32 128, 128
          %773 = vsyncadd %s764, %s772
          %s774 = smul.addr %s25, 8
          %s775 = smul.addr %s774, 16
          %s776 = scalar_lea.hbm %s3, %s775
          %s778 = sshll.u32 %s767, 4
          %s779 = int_to_ptr.vmem [resolvable:$true] %s778
          %781 = dma.vmem_to_hbm [thread:$0]  %s779, 128, %s776, %s764
        $region52: #{tpu_custom_call.1} parent=31 // pred_fallthru
          _
      $region32: #{tpu_custom_call.1} parent=5 // pred_fallthru
        _
      %p782 = scmp.le.s32.totalorder 2, %s16
      // Predicated region
      $region53: #{tpu_custom_call.1} parent=5 // pred_check
        %p783 = pneg %p782
      $region54: #{tpu_custom_call.1} parent=5 // pred_check_branch
        %785 = sbr.rel (%p783) target = $region56
      $region55: #{tpu_custom_call.1} parent=5 // pred_region
        %s786 = ssub.s32 %s16, 2
        // Predicated region
        $region57: #{tpu_custom_call.1} parent=55 // pred_check
          %p787 = pneg %p127
        $region58: #{tpu_custom_call.1} parent=55 // pred_check_branch
          %789 = sbr.rel (%p787) target = $region60
        $region59: #{tpu_custom_call.1} parent=55 // pred_region
          %s790 = sand.u32 %s112, 1
          %s791 = scalar_lea.sflag [#allocation6], %s790
          %s792 = sand.u32 %s112, 1
          %s793 = smul.addr %s792, 8
          %s794 = scalar_lea.vmem [#allocation9], %s793
          %795 = dma.done %s791, 128
        $region60: #{tpu_custom_call.1} parent=55 // pred_fallthru
          _
      $region56: #{tpu_custom_call.1} parent=5 // pred_fallthru
        _
    $region6: #{tpu_custom_call.1} parent=1 // loop_footer
      %s20 = sadd.s32 1, %s16
    $region7: #{tpu_custom_call.1} parent=1 // loop_footer_branch
      %15 = sbr.rel target = $region3
    $region8: #{tpu_custom_call.1} parent=1 // loop_exit
      _
    %796 = vsyncpa [#allocation5], 1
    %s797 = scalar_lea.sflag [#allocation5], 1
    %798 = vsyncpa %s797, 1
    %799 = vsyncpa [#allocation8], 1
    %800 = vsyncpa [#allocation6], 1
    %s801 = scalar_lea.sflag [#allocation6], 1
    %802 = vsyncpa %s801, 1

</llo_original>
